<compile_context>
chip_gen: v5e
topology: v5e:2x2
jax: 0.10.0
libtpu: 0.0.40
codegen_flags: <defaults>
</compile_context>

<pallas_src>
import jax
import jax.numpy as jnp
from jax.experimental import pallas as pl
from jax.experimental.pallas import tpu as pltpu


def _round_up(v, m):
    return ((v + m - 1) // m) * m


def _pick_tile(n_p, target, *, min_tiles=1):
    """Largest 128-multiple that divides n_p, is <= target, and (when possible)
    leaves at least `min_tiles` tiles along the axis."""
    m = n_p // 128
    cap = max(1, target // 128)
    if min_tiles > 1 and m >= min_tiles:
        cap = min(cap, m // min_tiles)
    cap = max(1, min(cap, m))
    best = 1
    for d in range(1, m + 1):
        if m % d == 0 and d <= cap:
            best = d
    return best * 128


# ----------------------------------------------------------------------------
# Kernels
# ----------------------------------------------------------------------------
def _make_agg_kernel(*, tk, x_resident, project, has_bias):
    """acc += adj_tile @ feat over the contraction grid axis; at the last step
    optionally project with the resident f32 weight, add bias, cast, store."""

    def kernel(*refs):
        idx = 0
        adj_ref = refs[idx]; idx += 1
        feat_ref = refs[idx]; idx += 1
        w_ref = None
        b_ref = None
        if project:
            w_ref = refs[idx]; idx += 1
        if has_bias:
            b_ref = refs[idx]; idx += 1
        o_ref = refs[idx]; idx += 1
        acc_ref = refs[idx]

        k = pl.program_id(1)

        @pl.when(k == 0)
        def _init():
            acc_ref[...] = jnp.zeros_like(acc_ref)

        if x_resident:
            start = pl.multiple_of(k * tk, 128)
            feat_blk = feat_ref[pl.ds(start, tk), :]
        else:
            feat_blk = feat_ref[...]

        acc_ref[...] += jnp.dot(adj_ref[...], feat_blk,
                                preferred_element_type=jnp.float32)

        @pl.when(k == pl.num_programs(1) - 1)
        def _finalize():
            res = acc_ref[...]
            if project:
                # f32 accumulator x f32 resident weight (no bf16 down-cast of
                # the large-magnitude partial sums).
                res = jnp.dot(res, w_ref[...], preferred_element_type=jnp.float32)
            if has_bias:
                res = res + b_ref[...]
            o_ref[...] = res.astype(o_ref.dtype)

    return kernel


def _project_kernel(x_ref, w_ref, o_ref):
    o_ref[...] = jnp.dot(x_ref[...], w_ref[...],
                         preferred_element_type=jnp.float32).astype(o_ref.dtype)


def _project(x_p, w_p, tm, vmem_limit_bytes):
    """support = x @ W (used when F_out_p < F_in_p so adj streams the narrower side)."""
    N_p, F_in_p = x_p.shape
    F_out_p = w_p.shape[1]
    return pl.pallas_call(
        _project_kernel,
        out_shape=jax.ShapeDtypeStruct((N_p, F_out_p), x_p.dtype),
        grid_spec=pltpu.PrefetchScalarGridSpec(
            num_scalar_prefetch=0,
            grid=(N_p // tm,),
            in_specs=[pl.BlockSpec((tm, F_in_p), lambda i: (i, 0)),
                      pl.BlockSpec((F_in_p, F_out_p), lambda i: (0, 0))],
            out_specs=pl.BlockSpec((tm, F_out_p), lambda i: (i, 0)),
        ),
        compiler_params=pltpu.CompilerParams(
            dimension_semantics=("parallel",),
            vmem_limit_bytes=vmem_limit_bytes,
        ),
    )(x_p, w_p)


# ----------------------------------------------------------------------------
# Public API
# ----------------------------------------------------------------------------
def prepare_adjacency(adj, *, compute_dtype=jnp.bfloat16):
    """Pad + cast the dense adjacency once; reuse across GCN layers/iterations.

    Note: casting a row-normalized adjacency to bf16 perturbs the row sums by
    ~1e-3 relative; pass compute_dtype=jnp.float32 if exact stochasticity matters.
    """
    n = adj.shape[0]
    n_p = _round_up(n, 128)
    return jnp.pad(adj.astype(compute_dtype), ((0, n_p - n), (0, n_p - n)))


def graph_convolution(x, adj, weight, bias=None, *,
                      compute_dtype=jnp.bfloat16,
                      tile_m=256, tile_k=512,
                      vmem_limit_bytes=48 * 1024 * 1024,
                      x_resident_budget_bytes=4 * 1024 * 1024):
    """Pallas GCN layer: adj @ (x @ weight) (+ bias).

    x:      [N, F_in]               (float32)
    adj:    [N, N] raw dense adjacency, OR [N_p, N_p] output of prepare_adjacency()
    weight: [F_in, F_out]
    bias:   [F_out] or None
    compute_dtype: dtype for the MXU-streamed operands (default bf16);
                   accumulation / projection / bias epilogue stay in f32.
    returns [N, F_out] in x.dtype
    """
    out_dtype = x.dtype
    N, F_in = x.shape
    F_in_w, F_out = weight.shape
    assert F_in_w == F_in, "weight/in_features mismatch"
    cdt = jnp.dtype(compute_dtype)

    N_p = _round_up(N, 128)
    F_in_p = _round_up(F_in, 128)
    F_out_p = _round_up(F_out, 128)

    tm = _pick_tile(N_p, tile_m, min_tiles=2)   # keep >=2 row tiles (v7x megacore)
    tk = _pick_tile(N_p, tile_k)

    # Adjacency: accept either the raw [N, N] matrix or one already padded/cast by
    # prepare_adjacency() (hoists the pad+cast HBM pass out of the per-layer call).
    if adj.shape == (N_p, N_p):
        adj_p = adj if adj.dtype == cdt else adj.astype(cdt)
    elif adj.shape == (N, N):
        adj_p = jnp.pad(adj.astype(cdt), ((0, N_p - N), (0, N_p - N)))
    else:
        raise ValueError(f"adj shape {adj.shape} incompatible with N={N} (N_p={N_p})")

    x_p = jnp.pad(x.astype(cdt), ((0, N_p - N), (0, F_in_p - F_in)))

    # Dynamic association: stream the narrower feature matrix through the N^2 matmul.
    project = F_in_p <= F_out_p
    if project:
        feat_p = x_p
        f_mid = F_in_p
        w_p = jnp.pad(weight.astype(jnp.float32),            # resident, f32 epilogue
                      ((0, F_in_p - F_in), (0, F_out_p - F_out)))
    else:
        w_cdt = jnp.pad(weight.astype(cdt),
                        ((0, F_in_p - F_in), (0, F_out_p - F_out)))
        feat_p = _project(x_p, w_cdt, tm, vmem_limit_bytes)   # support = x @ W
        f_mid = F_out_p
        w_p = None

    itemsize = cdt.itemsize
    x_resident = N_p * f_mid * itemsize <= x_resident_budget_bytes
    has_bias = bias is not None

    kernel = _make_agg_kernel(tk=tk, x_resident=x_resident,
                              project=project, has_bias=has_bias)

    grid = (N_p // tm, N_p // tk)

    in_specs = [pl.BlockSpec((tm, tk), lambda i, k: (i, k))]          # adj streams
    operands = [adj_p, feat_p]
    if x_resident:
        in_specs.append(pl.BlockSpec((N_p, f_mid), lambda i, k: (0, 0)))   # DMA'd once
    else:
        in_specs.append(pl.BlockSpec((tk, f_mid), lambda i, k: (k, 0)))    # streams with k
    if project:
        in_specs.append(pl.BlockSpec((F_in_p, F_out_p), lambda i, k: (0, 0)))  # resident
        operands.append(w_p)
    if has_bias:
        b_p = jnp.pad(bias.astype(jnp.float32).reshape(1, F_out),
                      ((0, 0), (0, F_out_p - F_out)))
        in_specs.append(pl.BlockSpec((1, F_out_p), lambda i, k: (0, 0)))
        operands.append(b_p)

    out_spec = pl.BlockSpec((tm, F_out_p), lambda i, k: (i, 0))
    scratch = [pltpu.VMEM((tm, f_mid), jnp.float32)]                  # f32 accumulator

    # Advisory cost estimate so XLA schedules surrounding pad/cast/slice ops well.
    flops = 2 * N_p * N_p * f_mid + (2 * N_p * F_in_p * F_out_p if project else 0)
    feat_bytes = N_p * f_mid * itemsize * (1 if x_resident else N_p // tm)
    bytes_accessed = (N_p * N_p * itemsize + feat_bytes
                      + (F_in_p * F_out_p * 4 if project else 0)
                      + (F_out_p * 4 if has_bias else 0)
                      + N_p * F_out_p * jnp.dtype(out_dtype).itemsize)
    cost = pl.CostEstimate(flops=int(flops), transcendentals=0,
                           bytes_accessed=int(bytes_accessed))

    out_p = pl.pallas_call(
        kernel,
        out_shape=jax.ShapeDtypeStruct((N_p, F_out_p), out_dtype),
        grid_spec=pltpu.PrefetchScalarGridSpec(
            num_scalar_prefetch=0,
            grid=grid,
            in_specs=in_specs,
            out_specs=out_spec,
            scratch_shapes=scratch,
        ),
        compiler_params=pltpu.CompilerParams(
            dimension_semantics=("parallel", "arbitrary"),
            vmem_limit_bytes=vmem_limit_bytes,
        ),
        cost_estimate=cost,
    )(*operands)

    return out_p[:N, :F_out]


# ----------------------------------------------------------------------------
# Parameter init + test harness
# ----------------------------------------------------------------------------
def init_gcn_params(key, in_features, out_features, bias=True, dtype=jnp.float32):
    """Reproduction of GraphConvolution.reset_parameters(): uniform(-stdv, stdv),
    stdv = 1/sqrt(out_features)."""
    stdv = 1.0 / float(out_features) ** 0.5
    kw, kb = jax.random.split(key)
    weight = jax.random.uniform(kw, (in_features, out_features), dtype=dtype,
                                minval=-stdv, maxval=stdv)
    b = None
    if bias:
        b = jax.random.uniform(kb, (out_features,), dtype=dtype,
                               minval=-stdv, maxval=stdv)
    return weight, b


def _make_graph(key, n, f_in, dtype=jnp.float32):
    k_x, k_a = jax.random.split(key)
    x = jax.random.normal(k_x, (n, f_in), dtype=dtype)
    a = jax.random.uniform(k_a, (n, n), dtype=dtype)
    a = (a > 0.8).astype(dtype)
    adj = a + a.T + jnp.eye(n, dtype=dtype)
    adj = adj / jnp.maximum(adj.sum(axis=1, keepdims=True), 1.0)
    return x, adj


if __name__ == "__main__":
    key = jax.random.PRNGKey(0)
    k_g1, k_p1, k_g2, k_p2, k_g3, k_p3 = jax.random.split(key, 6)

    def check(out, ref, tol, msg):
        err = float(jnp.max(jnp.abs(out - ref)) / (jnp.max(jnp.abs(ref)) + 1e-6))
        assert err <= tol, f"{msg}: relative error {err}"

    # --- Small case (module's intended tiny shapes) --------------------------
    N, F_IN, F_OUT = 64, 32, 48
    x, adj = _make_graph(k_g1, N, F_IN)
    weight, bias = init_gcn_params(k_p1, F_IN, F_OUT, bias=True)
    ref = adj @ (x @ weight) + bias[None, :]

    out = jax.block_until_ready(graph_convolution(x, adj, weight, bias))  # bf16 default
    assert out.shape == (N, F_OUT)
    check(out, ref, 3e-2, "small bf16")

    out_f32 = jax.block_until_ready(
        graph_convolution(x, adj, weight, bias, compute_dtype=jnp.float32))
    check(out_f32, ref, 1e-4, "small f32")

    out_nb = jax.block_until_ready(
        graph_convolution(x, adj, weight, None, compute_dtype=jnp.float32))
    check(out_nb, adj @ (x @ weight), 1e-4, "no-bias f32")

    # --- Larger case: divisor-aware padding (N_p=768, tm=256, tk=384, grid (3,2)),
    #     pre-padded adjacency reuse, and the streamed-x code path. ------------
    N2, F_IN2, F_OUT2 = 700, 100, 72
    x2, adj2 = _make_graph(k_g2, N2, F_IN2)
    weight2, bias2 = init_gcn_params(k_p2, F_IN2, F_OUT2, bias=True)
    ref2 = adj2 @ (x2 @ weight2) + bias2[None, :]

    out2 = jax.block_until_ready(graph_convolution(x2, adj2, weight2, bias2))
    assert out2.shape == (N2, F_OUT2)
    check(out2, ref2, 3e-2, "tiled bf16")

    out2_f32 = jax.block_until_ready(
        graph_convolution(x2, adj2, weight2, bias2, compute_dtype=jnp.float32))
    check(out2_f32, ref2, 1e-4, "tiled f32")

    adj2_prepped = prepare_adjacency(adj2)                  # pad+cast once, reuse
    out2_pre = jax.block_until_ready(
        graph_convolution(x2, adj2_prepped, weight2, bias2))
    check(out2_pre, ref2, 3e-2, "prepared-adj bf16")

    out2_stream = jax.block_until_ready(                    # force streamed-x path
        graph_convolution(x2, adj2, weight2, bias2, compute_dtype=jnp.float32,
                          x_resident_budget_bytes=0))
    check(out2_stream, ref2, 1e-4, "streamed-x f32")

    # --- F_out_p < F_in_p: pre-projected (support = x @ W) association --------
    N3, F_IN3, F_OUT3 = 256, 200, 64
    x3, adj3 = _make_graph(k_g3, N3, F_IN3)
    weight3, bias3 = init_gcn_params(k_p3, F_IN3, F_OUT3, bias=True)
    ref3 = adj3 @ (x3 @ weight3) + bias3[None, :]

    out3 = jax.block_until_ready(
        graph_convolution(x3, adj3, weight3, bias3, compute_dtype=jnp.float32))
    check(out3, ref3, 1e-4, "pre-projected f32")
    out3_bf16 = jax.block_until_ready(graph_convolution(x3, adj3, weight3, bias3))
    check(out3_bf16, ref3, 3e-2, "pre-projected bf16")

    print("KERNEL_OK")
</pallas_src>

<mosaic_0001>
module attributes {stable_mosaic.version = 11 : i64} {
  func.func @kernel(%arg0: i32, %arg1: i32, %arg2: memref<128x128xbf16, #tpu.memory_space<vmem>>, %arg3: memref<128x128xbf16, #tpu.memory_space<vmem>>, %arg4: memref<128x128xf32, #tpu.memory_space<vmem>>, %arg5: memref<1x128xf32, #tpu.memory_space<vmem>>, %arg6: memref<128x128xf32, #tpu.memory_space<vmem>>, %arg7: memref<128x128xf32, #tpu.memory_space<vmem>>) attributes {dimension_semantics = [#tpu.dimension_semantics<parallel>, #tpu.dimension_semantics<arbitrary>], iteration_bounds = array<i64: 1, 1>, scalar_prefetch = 0 : i64, scratch_operands = 1 : i64, tpu.core_type = #tpu.core_type<tc>, window_params = [{transform_indices = @transform_0, window_bounds = array<i64: 128, 128>}, {pipeline_mode = #tpu.pipeline_mode<synchronous>, transform_indices = @transform_1, window_bounds = array<i64: 128, 128>}, {pipeline_mode = #tpu.pipeline_mode<synchronous>, transform_indices = @transform_2, window_bounds = array<i64: 128, 128>}, {pipeline_mode = #tpu.pipeline_mode<synchronous>, transform_indices = @transform_3, window_bounds = array<i64: 1, 128>}, {transform_indices = @transform_4, window_bounds = array<i64: 128, 128>}]} {
    %c0_i32 = arith.constant 0 : i32
    %0 = arith.cmpi eq, %arg1, %c0_i32 : i32
    %1 = arith.extui %0 : i1 to i32
    %c0_i32_0 = arith.constant 0 : i32
    %2 = arith.cmpi ne, %1, %c0_i32_0 : i32
    scf.if %2 {
      %cst_9 = arith.constant 0.000000e+00 : f32
      %15 = vector.broadcast %cst_9 : f32 to vector<128x128xf32>
      %c0_10 = arith.constant 0 : index
      %c0_11 = arith.constant 0 : index
      %16 = vector.load %arg7[%c0_10, %c0_11] : memref<128x128xf32, #tpu.memory_space<vmem>>, vector<128x128xf32>
      tpu.vector_store %arg7[%c0_10, %c0_11], %15 {strides = array<i32>} : memref<128x128xf32, #tpu.memory_space<vmem>>, vector<128x128xf32>,
    } else {
    }
    %c128_i32 = arith.constant 128 : i32
    %3 = arith.muli %arg1, %c128_i32 : i32
    %4 = tpu.assume_multiple %3, 128 : i32
    %5 = arith.index_cast %4 : i32 to index
    %c0 = arith.constant 0 : index
    %6 = vector.load %arg3[%5, %c0] : memref<128x128xbf16, #tpu.memory_space<vmem>>, vector<128x128xbf16>
    %c0_1 = arith.constant 0 : index
    %c0_2 = arith.constant 0 : index
    %7 = vector.load %arg7[%c0_1, %c0_2] : memref<128x128xf32, #tpu.memory_space<vmem>>, vector<128x128xf32>
    %c0_3 = arith.constant 0 : index
    %c0_4 = arith.constant 0 : index
    %8 = vector.load %arg2[%c0_3, %c0_4] : memref<128x128xbf16, #tpu.memory_space<vmem>>, vector<128x128xbf16>
    %cst = arith.constant dense<0.000000e+00> : vector<128x128xf32>
    %9 = tpu.matmul %8, %6, %cst {dimension_numbers = #tpu.dot_dimension_numbers<[1], [0], [0], [1], [0, 0, 1, 1], [], []>} : vector<128x128xbf16>, vector<128x128xbf16>, vector<128x128xf32> -> vector<128x128xf32>
    %10 = arith.addf %7, %9 : vector<128x128xf32>
    %c0_5 = arith.constant 0 : index
    %c0_6 = arith.constant 0 : index
    %11 = vector.load %arg7[%c0_5, %c0_6] : memref<128x128xf32, #tpu.memory_space<vmem>>, vector<128x128xf32>
    tpu.vector_store %arg7[%c0_5, %c0_6], %10 {strides = array<i32>} : memref<128x128xf32, #tpu.memory_space<vmem>>, vector<128x128xf32>,
    %c0_i32_7 = arith.constant 0 : i32
    %12 = arith.cmpi eq, %arg1, %c0_i32_7 : i32
    %13 = arith.extui %12 : i1 to i32
    %c0_i32_8 = arith.constant 0 : i32
    %14 = arith.cmpi ne, %13, %c0_i32_8 : i32
    scf.if %14 {
      %c0_9 = arith.constant 0 : index
      %c0_10 = arith.constant 0 : index
      %15 = vector.load %arg7[%c0_9, %c0_10] : memref<128x128xf32, #tpu.memory_space<vmem>>, vector<128x128xf32>
      %c0_11 = arith.constant 0 : index
      %c0_12 = arith.constant 0 : index
      %16 = vector.load %arg4[%c0_11, %c0_12] : memref<128x128xf32, #tpu.memory_space<vmem>>, vector<128x128xf32>
      %cst_13 = arith.constant dense<0.000000e+00> : vector<128x128xf32>
      %17 = tpu.matmul %15, %16, %cst_13 {dimension_numbers = #tpu.dot_dimension_numbers<[1], [0], [0], [1], [0, 0, 1, 1], [], []>} : vector<128x128xf32>, vector<128x128xf32>, vector<128x128xf32> -> vector<128x128xf32>
      %c0_14 = arith.constant 0 : index
      %c0_15 = arith.constant 0 : index
      %18 = vector.load %arg5[%c0_14, %c0_15] : memref<1x128xf32, #tpu.memory_space<vmem>>, vector<1x128xf32>
      %19 = vector.broadcast %18 : vector<1x128xf32> to vector<128x128xf32>
      %20 = arith.addf %17, %19 : vector<128x128xf32>
      %c0_16 = arith.constant 0 : index
      %c0_17 = arith.constant 0 : index
      %21 = vector.load %arg6[%c0_16, %c0_17] : memref<128x128xf32, #tpu.memory_space<vmem>>, vector<128x128xf32>
      tpu.vector_store %arg6[%c0_16, %c0_17], %20 {strides = array<i32>} : memref<128x128xf32, #tpu.memory_space<vmem>>, vector<128x128xf32>,
    } else {
    }
    return
  }
  func.func @transform_0(%arg0: i32, %arg1: i32) -> (i32, i32) {
    %c0_i32 = arith.constant 0 : i32
    return %arg0, %arg1 : i32, i32
  }
  func.func @transform_1(%arg0: i32, %arg1: i32) -> (i32, i32) {
    %c0_i32 = arith.constant 0 : i32
    %c0_i32_0 = arith.constant 0 : i32
    %c0_i32_1 = arith.constant 0 : i32
    return %c0_i32, %c0_i32_0 : i32, i32
  }
  func.func @transform_2(%arg0: i32, %arg1: i32) -> (i32, i32) {
    %c0_i32 = arith.constant 0 : i32
    %c0_i32_0 = arith.constant 0 : i32
    %c0_i32_1 = arith.constant 0 : i32
    return %c0_i32, %c0_i32_0 : i32, i32
  }
  func.func @transform_3(%arg0: i32, %arg1: i32) -> (i32, i32) {
    %c0_i32 = arith.constant 0 : i32
    %c0_i32_0 = arith.constant 0 : i32
    %c0_i32_1 = arith.constant 0 : i32
    return %c0_i32, %c0_i32_0 : i32, i32
  }
  func.func @transform_4(%arg0: i32, %arg1: i32) -> (i32, i32) {
    %c0_i32 = arith.constant 0 : i32
    %c0_i32_0 = arith.constant 0 : i32
    return %arg0, %c0_i32 : i32, i32
  }
}

</mosaic_0001>

<llo_original>
// kernel: tpu_custom_call.1
$region0: #{tpu_custom_call.1}
  #allocation0 [shape = 'u32[]', space=smem, size = 0x4, offset = 0x4, fixed_abs, tag = 'smem constant byte address 0x4 - core index']
  #allocation1 [shape = 'u32[72,128]{1,0:T(1,128)}', space=vmem, size = 0x9000, scoped, tag = 'internal scratch']
  #allocation2 [shape = 'f32[128,128]{1,0:T(8,128)}', space=vmem, size = 0x10000, scoped, tag = 'scratch operand']
  %s0 = inlined_call_operand.hbm [shape: bf16[128,128], index: 0, kind: input, shape index: {}]
  %s1 = inlined_call_operand.hbm [shape: bf16[128,128], index: 1, kind: input, shape index: {}]
  %s2 = inlined_call_operand.hbm [shape: f32[128,128], index: 2, kind: input, shape index: {}]
  %s3 = inlined_call_operand.vmem [shape: f32[1,128], index: 3, kind: input, shape index: {}]
  %s4 = inlined_call_operand.hbm [shape: f32[128,128], index: 4, kind: output, shape index: {}]
  %s5 = sld [smem:[#allocation0]]
  $region46: #{tpu_custom_call.1} parent=0
    _
  %s7 = ssub.s32 1, %s5
  %s8 = scalar_select 0, %s7, %s5
  $region1: #{tpu_custom_call.1} parent=0
    #allocation3 [shape = 'u8[32768]{0}', space=vmem, size = 0x8000, scoped, tag = 'input window, operand 0, single buffered']
    #allocation4 [shape = 's32[1]{0}', space=sflag, size = 0x4, scoped, tag = 'scoped memory for tpu_custom_call.1']
    #allocation5 [shape = 's32[1]{0}', space=sflag, size = 0x4, scoped, tag = 'scoped memory for tpu_custom_call.1']
    #allocation6 [shape = 'u8[32768]{0}', space=vmem, size = 0x8000, scoped, tag = 'input window, operand 1, single buffered']
    #allocation7 [shape = 's32[1]{0}', space=sflag, size = 0x4, scoped, tag = 'scoped memory for tpu_custom_call.1']
    #allocation8 [shape = 'u8[65536]{0}', space=vmem, size = 0x10000, scoped, tag = 'input window, operand 2, single buffered']
    #allocation9 [shape = 'u8[65536]{0}', space=vmem, size = 0x10000, scoped, tag = 'output window, operand 0, single buffered']
    %9 = vsyncpa [#allocation4], 0
    %10 = vsyncpa [#allocation7], 0
    %11 = vsyncpa [#allocation5], 0
    // Predicated region
    $region2: #{tpu_custom_call.1} parent=1 // pred_check
      _
    $region3: #{tpu_custom_call.1} parent=1 // pred_check_branch
      %13 = sbr.rel (0) target = $region5
    $region4: #{tpu_custom_call.1} parent=1 // pred_region
      %15 = vsyncadd [#allocation4], 0
      %s16 = sshll.u32 %s0, 4
      %s17 = int_to_ptr.hbm [resolvable:$true] %s16
      %s18 = sshll.u32 [#allocation3], 4
      %s19 = int_to_ptr.vmem [resolvable:$true] %s18
      %24 = dma.hbm_to_vmem [thread:$0]  %s17, 1024, %s19, [#allocation4], 64, 64, 4
    $region5: #{tpu_custom_call.1} parent=1 // pred_fallthru
      _
    // Predicated region
    $region6: #{tpu_custom_call.1} parent=1 // pred_check
      _
    $region7: #{tpu_custom_call.1} parent=1 // pred_check_branch
      %26 = sbr.rel (0) target = $region9
    $region8: #{tpu_custom_call.1} parent=1 // pred_region
      %28 = vsyncadd [#allocation7], 0
      %s29 = sshll.u32 %s1, 4
      %s30 = int_to_ptr.hbm [resolvable:$true] %s29
      %s31 = sshll.u32 [#allocation6], 4
      %s32 = int_to_ptr.vmem [resolvable:$true] %s31
      %37 = dma.hbm_to_vmem [thread:$0]  %s30, 1024, %s32, [#allocation7], 64, 64, 4
    $region9: #{tpu_custom_call.1} parent=1 // pred_fallthru
      _
    // Predicated region
    $region10: #{tpu_custom_call.1} parent=1 // pred_check
      _
    $region11: #{tpu_custom_call.1} parent=1 // pred_check_branch
      %39 = sbr.rel (0) target = $region13
    $region12: #{tpu_custom_call.1} parent=1 // pred_region
      %41 = vsyncadd [#allocation7], 0
      %s42 = sshll.u32 %s2, 4
      %s43 = int_to_ptr.hbm [resolvable:$true] %s42
      %s44 = sshll.u32 [#allocation8], 4
      %s45 = int_to_ptr.vmem [resolvable:$true] %s44
      %50 = dma.hbm_to_vmem [thread:$0]  %s43, 2048, %s45, [#allocation7], 128, 128, 8
    $region13: #{tpu_custom_call.1} parent=1 // pred_fallthru
      _
    // Predicated region
    $region14: #{tpu_custom_call.1} parent=1 // pred_check
      _
    $region15: #{tpu_custom_call.1} parent=1 // pred_check_branch
      %52 = sbr.rel (0) target = $region17
    $region16: #{tpu_custom_call.1} parent=1 // pred_region
      _
    $region17: #{tpu_custom_call.1} parent=1 // pred_fallthru
      _
    // Predicated region
    $region18: #{tpu_custom_call.1} parent=1 // pred_check
      _
    $region19: #{tpu_custom_call.1} parent=1 // pred_check_branch
      %54 = sbr.rel (0) target = $region21
    $region20: #{tpu_custom_call.1} parent=1 // pred_region
      %56 = dma.done [#allocation4], 1024
    $region21: #{tpu_custom_call.1} parent=1 // pred_fallthru
      _
    // Predicated region
    $region22: #{tpu_custom_call.1} parent=1 // pred_check
      _
    $region23: #{tpu_custom_call.1} parent=1 // pred_check_branch
      %58 = sbr.rel (0) target = $region25
    $region24: #{tpu_custom_call.1} parent=1 // pred_region
      %60 = dma.done [#allocation7], 1024
    $region25: #{tpu_custom_call.1} parent=1 // pred_fallthru
      _
    // Predicated region
    $region26: #{tpu_custom_call.1} parent=1 // pred_check
      _
    $region27: #{tpu_custom_call.1} parent=1 // pred_check_branch
      %62 = sbr.rel (0) target = $region29
    $region28: #{tpu_custom_call.1} parent=1 // pred_region
      %64 = dma.done [#allocation7], 2048
    $region29: #{tpu_custom_call.1} parent=1 // pred_fallthru
      _
    %p65 = scmp.eq.s32.totalorder 0, 0
    // Predicated region
    $region30: #{tpu_custom_call.1} parent=1 // pred_check
      %p66 = pneg %p65
    $region31: #{tpu_custom_call.1} parent=1 // pred_check_branch
      %68 = sbr.rel (%p66) target = $region33
    $region32: #{tpu_custom_call.1} parent=1 // pred_region
      %69 = vst [vmem:[#allocation2] sm:$0xff] 0.0
      %70 = vst [vmem:[#allocation2 + $0x8] sm:$0xff] 0.0
      %71 = vst [vmem:[#allocation2 + $0x10] sm:$0xff] 0.0
      %72 = vst [vmem:[#allocation2 + $0x18] sm:$0xff] 0.0
      %73 = vst [vmem:[#allocation2 + $0x20] sm:$0xff] 0.0
      %74 = vst [vmem:[#allocation2 + $0x28] sm:$0xff] 0.0
      %75 = vst [vmem:[#allocation2 + $0x30] sm:$0xff] 0.0
      %76 = vst [vmem:[#allocation2 + $0x38] sm:$0xff] 0.0
      %77 = vst [vmem:[#allocation2 + $0x40] sm:$0xff] 0.0
      %78 = vst [vmem:[#allocation2 + $0x48] sm:$0xff] 0.0
      %79 = vst [vmem:[#allocation2 + $0x50] sm:$0xff] 0.0
      %80 = vst [vmem:[#allocation2 + $0x58] sm:$0xff] 0.0
      %81 = vst [vmem:[#allocation2 + $0x60] sm:$0xff] 0.0
      %82 = vst [vmem:[#allocation2 + $0x68] sm:$0xff] 0.0
      %83 = vst [vmem:[#allocation2 + $0x70] sm:$0xff] 0.0
      %84 = vst [vmem:[#allocation2 + $0x78] sm:$0xff] 0.0
    $region33: #{tpu_custom_call.1} parent=1 // pred_fallthru
      _
    %s85 = smul.u32 0, 128
    %s86 = sshra.s32 %s85, 3
    %s87 = sand.u32 %s85, 7
    %s88 = smul.addr %s86, 4
    %s89 = scalar_lea.vmem [#allocation6], %s88
    %v90 = vld [vmem:[%s89] sm:$0xf]
    %v91 = vld [vmem:[%s89 + $0x4] sm:$0xf]
    %v92 = vld [vmem:[%s89 + $0x8] sm:$0xf]
    %v93 = vld [vmem:[%s89 + $0xc] sm:$0xf]
    %v94 = vld [vmem:[%s89 + $0x10] sm:$0xf]
    %v95 = vld [vmem:[%s89 + $0x14] sm:$0xf]
    %v96 = vld [vmem:[%s89 + $0x18] sm:$0xf]
    %v97 = vld [vmem:[%s89 + $0x1c] sm:$0xf]
    %v98 = vld [vmem:[%s89 + $0x20] sm:$0xf]
    %v99 = vld [vmem:[%s89 + $0x24] sm:$0xf]
    %v100 = vld [vmem:[%s89 + $0x28] sm:$0xf]
    %v101 = vld [vmem:[%s89 + $0x2c] sm:$0xf]
    %v102 = vld [vmem:[%s89 + $0x30] sm:$0xf]
    %v103 = vld [vmem:[%s89 + $0x34] sm:$0xf]
    %v104 = vld [vmem:[%s89 + $0x38] sm:$0xf]
    %v105 = vld [vmem:[%s89 + $0x3c] sm:$0xf]
    %v106 = vld [vmem:[#allocation2] sm:$0xff]
    %v107 = vld [vmem:[#allocation2 + $0x8] sm:$0xff]
    %v108 = vld [vmem:[#allocation2 + $0x10] sm:$0xff]
    %v109 = vld [vmem:[#allocation2 + $0x18] sm:$0xff]
    %v110 = vld [vmem:[#allocation2 + $0x20] sm:$0xff]
    %v111 = vld [vmem:[#allocation2 + $0x28] sm:$0xff]
    %v112 = vld [vmem:[#allocation2 + $0x30] sm:$0xff]
    %v113 = vld [vmem:[#allocation2 + $0x38] sm:$0xff]
    %v114 = vld [vmem:[#allocation2 + $0x40] sm:$0xff]
    %v115 = vld [vmem:[#allocation2 + $0x48] sm:$0xff]
    %v116 = vld [vmem:[#allocation2 + $0x50] sm:$0xff]
    %v117 = vld [vmem:[#allocation2 + $0x58] sm:$0xff]
    %v118 = vld [vmem:[#allocation2 + $0x60] sm:$0xff]
    %v119 = vld [vmem:[#allocation2 + $0x68] sm:$0xff]
    %v120 = vld [vmem:[#allocation2 + $0x70] sm:$0xff]
    %v121 = vld [vmem:[#allocation2 + $0x78] sm:$0xff]
    %v122 = vld [vmem:[#allocation3] sm:$0xf]
    %v123 = vld [vmem:[#allocation3 + $0x4] sm:$0xf]
    %v124 = vld [vmem:[#allocation3 + $0x8] sm:$0xf]
    %v125 = vld [vmem:[#allocation3 + $0xc] sm:$0xf]
    %v126 = vld [vmem:[#allocation3 + $0x10] sm:$0xf]
    %v127 = vld [vmem:[#allocation3 + $0x14] sm:$0xf]
    %v128 = vld [vmem:[#allocation3 + $0x18] sm:$0xf]
    %v129 = vld [vmem:[#allocation3 + $0x1c] sm:$0xf]
    %v130 = vld [vmem:[#allocation3 + $0x20] sm:$0xf]
    %v131 = vld [vmem:[#allocation3 + $0x24] sm:$0xf]
    %v132 = vld [vmem:[#allocation3 + $0x28] sm:$0xf]
    %v133 = vld [vmem:[#allocation3 + $0x2c] sm:$0xf]
    %v134 = vld [vmem:[#allocation3 + $0x30] sm:$0xf]
    %v135 = vld [vmem:[#allocation3 + $0x34] sm:$0xf]
    %v136 = vld [vmem:[#allocation3 + $0x38] sm:$0xf]
    %v137 = vld [vmem:[#allocation3 + $0x3c] sm:$0xf]
    %v154 = vunpack.c.l.b16 %v122
    %v155 = vunpack.c.l.b16 %v123
    %v156 = vunpack.c.l.b16 %v124
    %v157 = vunpack.c.l.b16 %v125
    %v158 = vunpack.c.l.b16 %v126
    %v159 = vunpack.c.l.b16 %v127
    %v160 = vunpack.c.l.b16 %v128
    %v161 = vunpack.c.l.b16 %v129
    %v162 = vunpack.c.l.b16 %v130
    %v163 = vunpack.c.l.b16 %v131
    %v164 = vunpack.c.l.b16 %v132
    %v165 = vunpack.c.l.b16 %v133
    %v166 = vunpack.c.l.b16 %v134
    %v167 = vunpack.c.l.b16 %v135
    %v168 = vunpack.c.l.b16 %v136
    %v169 = vunpack.c.l.b16 %v137
    %v170 = vpack.c.b16 %v155, %v154
    %v171 = vpack.c.b16 %v157, %v156
    %v172 = vpack.c.b16 %v159, %v158
    %v173 = vpack.c.b16 %v161, %v160
    %v174 = vpack.c.b16 %v163, %v162
    %v175 = vpack.c.b16 %v165, %v164
    %v176 = vpack.c.b16 %v167, %v166
    %v177 = vpack.c.b16 %v169, %v168
    %v202 = vunpack.c.l.b16 %v90
    %v203 = vunpack.c.l.b16 %v91
    %v204 = vunpack.c.l.b16 %v92
    %v205 = vunpack.c.l.b16 %v93
    %v206 = vunpack.c.l.b16 %v94
    %v207 = vunpack.c.l.b16 %v95
    %v208 = vunpack.c.l.b16 %v96
    %v209 = vunpack.c.l.b16 %v97
    %v210 = vunpack.c.l.b16 %v98
    %v211 = vunpack.c.l.b16 %v99
    %v212 = vunpack.c.l.b16 %v100
    %v213 = vunpack.c.l.b16 %v101
    %v214 = vunpack.c.l.b16 %v102
    %v215 = vunpack.c.l.b16 %v103
    %v216 = vunpack.c.l.b16 %v104
    %v217 = vunpack.c.l.b16 %v105
    %v218 = vpack.c.b16 %v203, %v202
    %v219 = vpack.c.b16 %v205, %v204
    %v220 = vpack.c.b16 %v207, %v206
    %v221 = vpack.c.b16 %v209, %v208
    %v222 = vpack.c.b16 %v211, %v210
    %v223 = vpack.c.b16 %v213, %v212
    %v224 = vpack.c.b16 %v215, %v214
    %v225 = vpack.c.b16 %v217, %v216
    %234 = vmatpush.bf16.msra.mxu0 %v225
    %235 = vmatpush.bf16.msra.mxu0 %v224
    %236 = vmatpush.bf16.msra.mxu0 %v223
    %237 = vmatpush.bf16.msra.mxu0 %v222
    %238 = vmatpush.bf16.msra.mxu0 %v221
    %239 = vmatpush.bf16.msra.mxu0 %v220
    %240 = vmatpush.bf16.msra.mxu0 %v219
    %241 = vmatpush.bf16.msra.mxu0 %v218
    %242 = vmatmul.bf16.gmra.mxu0 %v170
    %v243 = vpop.f32.mrf.mxu0
    %v244 = vadd.f32 0.0, %v243
    %v245 = vpop.f32.mrf.mxu0
    %v246 = vadd.f32 0.0, %v245
    %247 = vmatmul.bf16.gmra.mxu0 %v171
    %v248 = vpop.f32.mrf.mxu0
    %v249 = vadd.f32 0.0, %v248
    %v250 = vpop.f32.mrf.mxu0
    %v251 = vadd.f32 0.0, %v250
    %252 = vmatmul.bf16.gmra.mxu0 %v172
    %v253 = vpop.f32.mrf.mxu0
    %v254 = vadd.f32 0.0, %v253
    %v255 = vpop.f32.mrf.mxu0
    %v256 = vadd.f32 0.0, %v255
    %257 = vmatmul.bf16.gmra.mxu0 %v173
    %v258 = vpop.f32.mrf.mxu0
    %v259 = vadd.f32 0.0, %v258
    %v260 = vpop.f32.mrf.mxu0
    %v261 = vadd.f32 0.0, %v260
    %262 = vmatmul.bf16.gmra.mxu0 %v174
    %v263 = vpop.f32.mrf.mxu0
    %v264 = vadd.f32 0.0, %v263
    %v265 = vpop.f32.mrf.mxu0
    %v266 = vadd.f32 0.0, %v265
    %267 = vmatmul.bf16.gmra.mxu0 %v175
    %v268 = vpop.f32.mrf.mxu0
    %v269 = vadd.f32 0.0, %v268
    %v270 = vpop.f32.mrf.mxu0
    %v271 = vadd.f32 0.0, %v270
    %272 = vmatmul.bf16.gmra.mxu0 %v176
    %v273 = vpop.f32.mrf.mxu0
    %v274 = vadd.f32 0.0, %v273
    %v275 = vpop.f32.mrf.mxu0
    %v276 = vadd.f32 0.0, %v275
    %277 = vmatmul.bf16.gmra.mxu0 %v177
    %v278 = vpop.f32.mrf.mxu0
    %v279 = vadd.f32 0.0, %v278
    %v280 = vpop.f32.mrf.mxu0
    %v281 = vadd.f32 0.0, %v280
    %282 = vdwg.mxu0
    %v283 = vadd.f32 %v106, %v244
    %v284 = vadd.f32 %v107, %v246
    %v285 = vadd.f32 %v108, %v249
    %v286 = vadd.f32 %v109, %v251
    %v287 = vadd.f32 %v110, %v254
    %v288 = vadd.f32 %v111, %v256
    %v289 = vadd.f32 %v112, %v259
    %v290 = vadd.f32 %v113, %v261
    %v291 = vadd.f32 %v114, %v264
    %v292 = vadd.f32 %v115, %v266
    %v293 = vadd.f32 %v116, %v269
    %v294 = vadd.f32 %v117, %v271
    %v295 = vadd.f32 %v118, %v274
    %v296 = vadd.f32 %v119, %v276
    %v297 = vadd.f32 %v120, %v279
    %v298 = vadd.f32 %v121, %v281
    %299 = vst [vmem:[#allocation2] sm:$0xff] %v283
    %300 = vst [vmem:[#allocation2 + $0x8] sm:$0xff] %v284
    %301 = vst [vmem:[#allocation2 + $0x10] sm:$0xff] %v285
    %302 = vst [vmem:[#allocation2 + $0x18] sm:$0xff] %v286
    %303 = vst [vmem:[#allocation2 + $0x20] sm:$0xff] %v287
    %304 = vst [vmem:[#allocation2 + $0x28] sm:$0xff] %v288
    %305 = vst [vmem:[#allocation2 + $0x30] sm:$0xff] %v289
    %306 = vst [vmem:[#allocation2 + $0x38] sm:$0xff] %v290
    %307 = vst [vmem:[#allocation2 + $0x40] sm:$0xff] %v291
    %308 = vst [vmem:[#allocation2 + $0x48] sm:$0xff] %v292
    %309 = vst [vmem:[#allocation2 + $0x50] sm:$0xff] %v293
    %310 = vst [vmem:[#allocation2 + $0x58] sm:$0xff] %v294
    %311 = vst [vmem:[#allocation2 + $0x60] sm:$0xff] %v295
    %312 = vst [vmem:[#allocation2 + $0x68] sm:$0xff] %v296
    %313 = vst [vmem:[#allocation2 + $0x70] sm:$0xff] %v297
    %314 = vst [vmem:[#allocation2 + $0x78] sm:$0xff] %v298
    // Predicated region
    $region34: #{tpu_custom_call.1} parent=1 // pred_check
      %p315 = pneg %p65
    $region35: #{tpu_custom_call.1} parent=1 // pred_check_branch
      %317 = sbr.rel (%p315) target = $region37
    $region36: #{tpu_custom_call.1} parent=1 // pred_region
      %v318 = vld [vmem:[#allocation2] sm:$0xff]
      %v319 = vld [vmem:[#allocation2 + $0x8] sm:$0xff]
      %v320 = vld [vmem:[#allocation2 + $0x10] sm:$0xff]
      %v321 = vld [vmem:[#allocation2 + $0x18] sm:$0xff]
      %v322 = vld [vmem:[#allocation2 + $0x20] sm:$0xff]
      %v323 = vld [vmem:[#allocation2 + $0x28] sm:$0xff]
      %v324 = vld [vmem:[#allocation2 + $0x30] sm:$0xff]
      %v325 = vld [vmem:[#allocation2 + $0x38] sm:$0xff]
      %v326 = vld [vmem:[#allocation2 + $0x40] sm:$0xff]
      %v327 = vld [vmem:[#allocation2 + $0x48] sm:$0xff]
      %v328 = vld [vmem:[#allocation2 + $0x50] sm:$0xff]
      %v329 = vld [vmem:[#allocation2 + $0x58] sm:$0xff]
      %v330 = vld [vmem:[#allocation2 + $0x60] sm:$0xff]
      %v331 = vld [vmem:[#allocation2 + $0x68] sm:$0xff]
      %v332 = vld [vmem:[#allocation2 + $0x70] sm:$0xff]
      %v333 = vld [vmem:[#allocation2 + $0x78] sm:$0xff]
      %v334 = vld [vmem:[#allocation8] sm:$0xff]
      %v335 = vld [vmem:[#allocation8 + $0x8] sm:$0xff]
      %v336 = vld [vmem:[#allocation8 + $0x10] sm:$0xff]
      %v337 = vld [vmem:[#allocation8 + $0x18] sm:$0xff]
      %v338 = vld [vmem:[#allocation8 + $0x20] sm:$0xff]
      %v339 = vld [vmem:[#allocation8 + $0x28] sm:$0xff]
      %v340 = vld [vmem:[#allocation8 + $0x30] sm:$0xff]
      %v341 = vld [vmem:[#allocation8 + $0x38] sm:$0xff]
      %v342 = vld [vmem:[#allocation8 + $0x40] sm:$0xff]
      %v343 = vld [vmem:[#allocation8 + $0x48] sm:$0xff]
      %v344 = vld [vmem:[#allocation8 + $0x50] sm:$0xff]
      %v345 = vld [vmem:[#allocation8 + $0x58] sm:$0xff]
      %v346 = vld [vmem:[#allocation8 + $0x60] sm:$0xff]
      %v347 = vld [vmem:[#allocation8 + $0x68] sm:$0xff]
      %v348 = vld [vmem:[#allocation8 + $0x70] sm:$0xff]
      %v349 = vld [vmem:[#allocation8 + $0x78] sm:$0xff]
      %v350 = vld [vmem:[%s3] sm:$0x1]
      %v352 = vperm.slane %v350, 0
      %354 = vmatpush.msra.mxu0 %v349
      %355 = vmatpush.msra.mxu0 %v348
      %356 = vmatpush.msra.mxu0 %v347
      %357 = vmatpush.msra.mxu0 %v346
      %358 = vmatpush.msra.mxu0 %v345
      %359 = vmatpush.msra.mxu0 %v344
      %360 = vmatpush.msra.mxu0 %v343
      %361 = vmatpush.msra.mxu0 %v342
      %362 = vmatpush.msra.mxu0 %v341
      %363 = vmatpush.msra.mxu0 %v340
      %364 = vmatpush.msra.mxu0 %v339
      %365 = vmatpush.msra.mxu0 %v338
      %366 = vmatpush.msra.mxu0 %v337
      %367 = vmatpush.msra.mxu0 %v336
      %368 = vmatpush.msra.mxu0 %v335
      %369 = vmatpush.msra.mxu0 %v334
      %370 = vmatmul.f32.gmra.mxu0 %v318
      %v371 = vpop.f32.mrf.mxu0
      %v372 = vadd.f32 %v352, %v371
      %373 = vmatmul.f32.gmra.mxu0 %v319
      %v374 = vpop.f32.mrf.mxu0
      %v375 = vadd.f32 %v352, %v374
      %376 = vmatmul.f32.gmra.mxu0 %v320
      %v377 = vpop.f32.mrf.mxu0
      %v378 = vadd.f32 %v352, %v377
      %379 = vmatmul.f32.gmra.mxu0 %v321
      %v380 = vpop.f32.mrf.mxu0
      %v381 = vadd.f32 %v352, %v380
      %382 = vmatmul.f32.gmra.mxu0 %v322
      %v383 = vpop.f32.mrf.mxu0
      %v384 = vadd.f32 %v352, %v383
      %385 = vmatmul.f32.gmra.mxu0 %v323
      %v386 = vpop.f32.mrf.mxu0
      %v387 = vadd.f32 %v352, %v386
      %388 = vmatmul.f32.gmra.mxu0 %v324
      %v389 = vpop.f32.mrf.mxu0
      %v390 = vadd.f32 %v352, %v389
      %391 = vmatmul.f32.gmra.mxu0 %v325
      %v392 = vpop.f32.mrf.mxu0
      %v393 = vadd.f32 %v352, %v392
      %394 = vmatmul.f32.gmra.mxu0 %v326
      %v395 = vpop.f32.mrf.mxu0
      %v396 = vadd.f32 %v352, %v395
      %397 = vmatmul.f32.gmra.mxu0 %v327
      %v398 = vpop.f32.mrf.mxu0
      %v399 = vadd.f32 %v352, %v398
      %400 = vmatmul.f32.gmra.mxu0 %v328
      %v401 = vpop.f32.mrf.mxu0
      %v402 = vadd.f32 %v352, %v401
      %403 = vmatmul.f32.gmra.mxu0 %v329
      %v404 = vpop.f32.mrf.mxu0
      %v405 = vadd.f32 %v352, %v404
      %406 = vmatmul.f32.gmra.mxu0 %v330
      %v407 = vpop.f32.mrf.mxu0
      %v408 = vadd.f32 %v352, %v407
      %409 = vmatmul.f32.gmra.mxu0 %v331
      %v410 = vpop.f32.mrf.mxu0
      %v411 = vadd.f32 %v352, %v410
      %412 = vmatmul.f32.gmra.mxu0 %v332
      %v413 = vpop.f32.mrf.mxu0
      %v414 = vadd.f32 %v352, %v413
      %415 = vmatmul.f32.gmra.mxu0 %v333
      %v416 = vpop.f32.mrf.mxu0
      %v417 = vadd.f32 %v352, %v416
      %418 = vdwg.mxu0
      %419 = vst [vmem:[#allocation9] sm:$0xff] %v372
      %420 = vst [vmem:[#allocation9 + $0x8] sm:$0xff] %v375
      %421 = vst [vmem:[#allocation9 + $0x10] sm:$0xff] %v378
      %422 = vst [vmem:[#allocation9 + $0x18] sm:$0xff] %v381
      %423 = vst [vmem:[#allocation9 + $0x20] sm:$0xff] %v384
      %424 = vst [vmem:[#allocation9 + $0x28] sm:$0xff] %v387
      %425 = vst [vmem:[#allocation9 + $0x30] sm:$0xff] %v390
      %426 = vst [vmem:[#allocation9 + $0x38] sm:$0xff] %v393
      %427 = vst [vmem:[#allocation9 + $0x40] sm:$0xff] %v396
      %428 = vst [vmem:[#allocation9 + $0x48] sm:$0xff] %v399
      %429 = vst [vmem:[#allocation9 + $0x50] sm:$0xff] %v402
      %430 = vst [vmem:[#allocation9 + $0x58] sm:$0xff] %v405
      %431 = vst [vmem:[#allocation9 + $0x60] sm:$0xff] %v408
      %432 = vst [vmem:[#allocation9 + $0x68] sm:$0xff] %v411
      %433 = vst [vmem:[#allocation9 + $0x70] sm:$0xff] %v414
      %434 = vst [vmem:[#allocation9 + $0x78] sm:$0xff] %v417
    $region37: #{tpu_custom_call.1} parent=1 // pred_fallthru
      _
    // Predicated region
    $region38: #{tpu_custom_call.1} parent=1 // pred_check
      _
    $region39: #{tpu_custom_call.1} parent=1 // pred_check_branch
      %436 = sbr.rel (0) target = $region41
    $region40: #{tpu_custom_call.1} parent=1 // pred_region
      %438 = vsyncadd [#allocation5], 0
      %s439 = sshll.u32 [#allocation9], 4
      %s440 = int_to_ptr.vmem [resolvable:$true] %s439
      %s441 = sshll.u32 %s4, 4
      %s442 = int_to_ptr.hbm [resolvable:$true] %s441
      %447 = dma.vmem_to_hbm [thread:$0]  %s440, 2048, %s442, [#allocation5], 128, 128, 8
    $region41: #{tpu_custom_call.1} parent=1 // pred_fallthru
      _
    // Predicated region
    $region42: #{tpu_custom_call.1} parent=1 // pred_check
      _
    $region43: #{tpu_custom_call.1} parent=1 // pred_check_branch
      %449 = sbr.rel (0) target = $region45
    $region44: #{tpu_custom_call.1} parent=1 // pred_region
      %451 = dma.done [#allocation5], 2048
    $region45: #{tpu_custom_call.1} parent=1 // pred_fallthru
      _
    %452 = vsyncpa [#allocation4], 1
    %453 = vsyncpa [#allocation7], 1
    %454 = vsyncpa [#allocation5], 1

</llo_original>
